<compile_context>
chip_gen: v7x
topology: tpu7x:2x2x1
jax: 0.10.0
libtpu: 0.0.40
codegen_flags: <defaults>
</compile_context>

<pallas_src>
import functools

import jax
import jax.numpy as jnp
from jax.experimental import pallas as pl
from jax.experimental.pallas import tpu as pltpu

FEAT_IN, HIDDEN, FEAT_OUT = 7, 50, 1

TC = 256        # in-kernel sub-chunk width (lanes); keeps (50, TC) f32 in vregs
TB_MAX = 2048   # batch-tile (BlockSpec) width; 8 sub-chunks per grid step

# w @ x_chunk.T : contract dim 1 of both operands ("NT", as in flash attention).
NT_DIMS = (((1,), (1,)), ((), ()))
NN_DIMS = (((1,), (0,)), ((), ()))


def pm_net_kernel(x_ref, w1_ref, b1_ref, w2_ref, b2_ref, w3_ref, b3_ref, o_ref,
                  *, num_chunks, tc):
    # x_ref: (TB, 7); w1: (50, 7) f32; w2: (50, 50); w3: (1, 50); biases (out, 1) f32.
    # Weights/biases are VMEM-resident; load them once per grid step.
    w1 = w1_ref[...]
    b1 = b1_ref[...]
    w2 = w2_ref[...]
    b2 = b2_ref[...]
    w3 = w3_ref[...]
    b3 = b3_ref[...]

    # Static (Python-unrolled) sub-chunk loop: every slice start is a constant,
    # so loads/stores lower to plain aligned vector accesses.
    for c in range(num_chunks):
        lo, hi = c * tc, (c + 1) * tc
        # (tc, 7) chunk.  Layer 1 runs in f32 (K=7 is tiny; no-op cast in the
        # f32 path), contracting the feature axis directly -- no wrapper
        # transpose needed, the XLU handles the tiny relayout for free.
        xs = x_ref[lo:hi, :].astype(jnp.float32)
        h1 = jax.lax.dot_general(w1, xs, NT_DIMS,
                                 preferred_element_type=jnp.float32) + b1
        h1 = jnp.maximum(h1, 0.0)                                   # (50, tc) f32
        h2 = jax.lax.dot_general(w2, h1.astype(w2.dtype), NN_DIMS,
                                 preferred_element_type=jnp.float32) + b2
        h2 = jnp.maximum(h2, 0.0)                                   # (50, tc) f32
        y = jax.lax.dot_general(w3, h2.astype(w3.dtype), NN_DIMS,
                                preferred_element_type=jnp.float32) + b3
        o_ref[:, lo:hi] = y.astype(o_ref.dtype)                     # (1, tc) lane-dense


def pm_net_forward(x, params, use_bf16=False):
    """x: (B, 7) float32.  params: w1 (50,7), b1 (50,1), w2 (50,50), b2 (50,1),
    w3 (1,50), b3 (1,1).  Returns (B, 1) float32."""
    B = x.shape[0]

    # Batch tile: multiple of TC, capped at TB_MAX; grid = B_pad // TB.
    TB = min(TB_MAX, TC * pl.cdiv(B, TC))
    B_pad = TB * pl.cdiv(B, TB)
    num_chunks = TB // TC

    w1, b1 = params["w1"], params["b1"]
    w2, b2 = params["w2"], params["b2"]
    w3, b3 = params["w3"], params["b3"]

    if use_bf16:
        # Halve the dominant x DMA + bf16 MXU for the 50x50 layer (v6e/v7x).
        # w1 / layer-1 and the bias/ReLU epilogues stay f32 (v5e-safe).
        x = x.astype(jnp.bfloat16)
        w2 = w2.astype(jnp.bfloat16)
        w3 = w3.astype(jnp.bfloat16)

    if B_pad != B:
        # Only copy x when the batch is not already a multiple of TB.
        x = jnp.pad(x, ((0, B_pad - B), (0, 0)))

    resident = lambda a: pl.BlockSpec(a.shape, lambda i: (0, 0))

    out_t = pl.pallas_call(
        functools.partial(pm_net_kernel, num_chunks=num_chunks, tc=TC),
        out_shape=jax.ShapeDtypeStruct((FEAT_OUT, B_pad), jnp.float32),
        grid=(B_pad // TB,),
        in_specs=[
            pl.BlockSpec((TB, FEAT_IN), lambda i: (i, 0)),   # x tile, pipelined
            resident(w1), resident(b1),                      # weights stay in VMEM
            resident(w2), resident(b2),
            resident(w3), resident(b3),
        ],
        out_specs=pl.BlockSpec((FEAT_OUT, TB), lambda i: (0, i)),  # lane-dense (1, TB)
        compiler_params=pltpu.CompilerParams(
            dimension_semantics=("parallel",),  # 2-TC sharding on v7x; no-op on v5e/v6e
        ),
    )(x, w1, b1, w2, b2, w3, b3)

    return out_t[:, :B].T  # (B, 1)


def init_params(key):
    """Deterministic init mimicking nn.Linear's U(-1/sqrt(fan_in), 1/sqrt(fan_in)).
    Weights stored as (out, in) (PyTorch layout), biases as (out, 1)."""
    ks = jax.random.split(key, 6)

    def linear(kw, kb, fan_in, fan_out):
        bound = 1.0 / jnp.sqrt(float(fan_in))
        w = jax.random.uniform(kw, (fan_out, fan_in), jnp.float32, -bound, bound)
        b = jax.random.uniform(kb, (fan_out, 1), jnp.float32, -bound, bound)
        return w, b

    w1, b1 = linear(ks[0], ks[1], FEAT_IN, HIDDEN)
    w2, b2 = linear(ks[2], ks[3], HIDDEN, HIDDEN)
    w3, b3 = linear(ks[4], ks[5], HIDDEN, FEAT_OUT)
    return {"w1": w1, "b1": b1, "w2": w2, "b2": b2, "w3": w3, "b3": b3}


def pm_net_reference(x, p):
    h1 = jnp.maximum(x @ p["w1"].T + p["b1"].T, 0.0)
    h2 = jnp.maximum(h1 @ p["w2"].T + p["b2"].T, 0.0)
    return h2 @ p["w3"].T + p["b3"].T


if __name__ == "__main__":
    key = jax.random.PRNGKey(0)
    k_params, k_x = jax.random.split(key)

    params = init_params(k_params)

    # Small validation batch (f32 path, exact-ish vs reference).
    batch = 8
    x = jax.random.normal(k_x, (batch, 7), dtype=jnp.float32)
    out = jax.block_until_ready(pm_net_forward(x, params))
    ref = pm_net_reference(x, params)
    assert out.shape == (batch, 1), out.shape
    assert jnp.allclose(out, ref, atol=1e-5, rtol=1e-5), "mismatch vs reference (f32 small)"

    # Mid batch: single grid step, 4 in-kernel sub-chunks, uneven (padded) tail.
    mid = 1000
    xm = jax.random.normal(jax.random.PRNGKey(1), (mid, 7), dtype=jnp.float32)
    outm = jax.block_until_ready(pm_net_forward(xm, params))
    refm = pm_net_reference(xm, params)
    assert outm.shape == (mid, 1), outm.shape
    assert jnp.allclose(outm, refm, atol=1e-5, rtol=1e-5), "mismatch vs reference (mid batch)"

    # Larger batch: multiple TB=2048 grid steps (exercises the pipelined grid).
    big = 4608
    xb = jax.random.normal(jax.random.PRNGKey(2), (big, 7), dtype=jnp.float32)
    outb = jax.block_until_ready(pm_net_forward(xb, params))
    refb = pm_net_reference(xb, params)
    assert outb.shape == (big, 1), outb.shape
    assert jnp.allclose(outb, refb, atol=1e-5, rtol=1e-5), "mismatch vs reference (big batch)"

    # bf16 MXU / bf16-x path (v6e/v7x); looser tolerance by design.
    outbf = jax.block_until_ready(pm_net_forward(xm, params, use_bf16=True))
    assert jnp.allclose(outbf, refm, atol=5e-2, rtol=5e-2), "mismatch vs reference (bf16)"

    print("KERNEL_OK")
</pallas_src>

<mosaic_0001>
module attributes {stable_mosaic.version = 11 : i64} {
  func.func @pm_net_kernel(%arg0: i32, %arg1: memref<256x7xf32, #tpu.memory_space<vmem>>, %arg2: memref<50x7xf32, #tpu.memory_space<vmem>>, %arg3: memref<50x1xf32, #tpu.memory_space<vmem>>, %arg4: memref<50x50xf32, #tpu.memory_space<vmem>>, %arg5: memref<50x1xf32, #tpu.memory_space<vmem>>, %arg6: memref<1x50xf32, #tpu.memory_space<vmem>>, %arg7: memref<1x1xf32, #tpu.memory_space<vmem>>, %arg8: memref<1x256xf32, #tpu.memory_space<vmem>>) attributes {dimension_semantics = [#tpu.dimension_semantics<parallel>], iteration_bounds = array<i64: 1>, scalar_prefetch = 0 : i64, scratch_operands = 0 : i64, tpu.core_type = #tpu.core_type<tc>, window_params = [{transform_indices = @transform_0, window_bounds = array<i64: 256, 7>}, {pipeline_mode = #tpu.pipeline_mode<synchronous>, transform_indices = @transform_1, window_bounds = array<i64: 50, 7>}, {pipeline_mode = #tpu.pipeline_mode<synchronous>, transform_indices = @transform_2, window_bounds = array<i64: 50, 1>}, {pipeline_mode = #tpu.pipeline_mode<synchronous>, transform_indices = @transform_3, window_bounds = array<i64: 50, 50>}, {pipeline_mode = #tpu.pipeline_mode<synchronous>, transform_indices = @transform_4, window_bounds = array<i64: 50, 1>}, {pipeline_mode = #tpu.pipeline_mode<synchronous>, transform_indices = @transform_5, window_bounds = array<i64: 1, 50>}, {pipeline_mode = #tpu.pipeline_mode<synchronous>, transform_indices = @transform_6, window_bounds = array<i64: 1, 1>}, {transform_indices = @transform_7, window_bounds = array<i64: 1, 256>}]} {
    %c0 = arith.constant 0 : index
    %c0_0 = arith.constant 0 : index
    %0 = vector.load %arg2[%c0, %c0_0] : memref<50x7xf32, #tpu.memory_space<vmem>>, vector<50x7xf32>
    %c0_1 = arith.constant 0 : index
    %c0_2 = arith.constant 0 : index
    %1 = vector.load %arg3[%c0_1, %c0_2] : memref<50x1xf32, #tpu.memory_space<vmem>>, vector<50x1xf32>
    %c0_3 = arith.constant 0 : index
    %c0_4 = arith.constant 0 : index
    %2 = vector.load %arg4[%c0_3, %c0_4] : memref<50x50xf32, #tpu.memory_space<vmem>>, vector<50x50xf32>
    %c0_5 = arith.constant 0 : index
    %c0_6 = arith.constant 0 : index
    %3 = vector.load %arg5[%c0_5, %c0_6] : memref<50x1xf32, #tpu.memory_space<vmem>>, vector<50x1xf32>
    %c0_7 = arith.constant 0 : index
    %c0_8 = arith.constant 0 : index
    %4 = vector.load %arg6[%c0_7, %c0_8] : memref<1x50xf32, #tpu.memory_space<vmem>>, vector<1x50xf32>
    %c0_9 = arith.constant 0 : index
    %c0_10 = arith.constant 0 : index
    %5 = vector.load %arg7[%c0_9, %c0_10] : memref<1x1xf32, #tpu.memory_space<vmem>>, vector<1x1xf32>
    %c0_11 = arith.constant 0 : index
    %c0_12 = arith.constant 0 : index
    %6 = vector.load %arg1[%c0_11, %c0_12] : memref<256x7xf32, #tpu.memory_space<vmem>>, vector<256x7xf32>
    %cst = arith.constant dense<0.000000e+00> : vector<50x256xf32>
    %7 = tpu.matmul %0, %6, %cst {dimension_numbers = #tpu.dot_dimension_numbers<[1], [1], [0], [0], [0, 0, 1, 0], [], []>} : vector<50x7xf32>, vector<256x7xf32>, vector<50x256xf32> -> vector<50x256xf32>
    %8 = vector.broadcast %1 : vector<50x1xf32> to vector<50x256xf32>
    %9 = arith.addf %7, %8 : vector<50x256xf32>
    %cst_13 = arith.constant 0.000000e+00 : f32
    %10 = vector.broadcast %cst_13 : f32 to vector<50x256xf32>
    %11 = arith.maximumf %9, %10 : vector<50x256xf32>
    %cst_14 = arith.constant dense<0.000000e+00> : vector<50x256xf32>
    %12 = tpu.matmul %2, %11, %cst_14 {dimension_numbers = #tpu.dot_dimension_numbers<[1], [0], [0], [1], [0, 0, 1, 1], [], []>} : vector<50x50xf32>, vector<50x256xf32>, vector<50x256xf32> -> vector<50x256xf32>
    %13 = vector.broadcast %3 : vector<50x1xf32> to vector<50x256xf32>
    %14 = arith.addf %12, %13 : vector<50x256xf32>
    %cst_15 = arith.constant 0.000000e+00 : f32
    %15 = vector.broadcast %cst_15 : f32 to vector<50x256xf32>
    %16 = arith.maximumf %14, %15 : vector<50x256xf32>
    %cst_16 = arith.constant dense<0.000000e+00> : vector<1x256xf32>
    %17 = tpu.matmul %4, %16, %cst_16 {dimension_numbers = #tpu.dot_dimension_numbers<[1], [0], [0], [1], [0, 0, 1, 1], [], []>} : vector<1x50xf32>, vector<50x256xf32>, vector<1x256xf32> -> vector<1x256xf32>
    %18 = vector.broadcast %5 : vector<1x1xf32> to vector<1x256xf32>
    %19 = arith.addf %17, %18 : vector<1x256xf32>
    %c0_17 = arith.constant 0 : index
    %c0_18 = arith.constant 0 : index
    %20 = vector.load %arg8[%c0_17, %c0_18] : memref<1x256xf32, #tpu.memory_space<vmem>>, vector<1x256xf32>
    tpu.vector_store %arg8[%c0_17, %c0_18], %19 {strides = array<i32>} : memref<1x256xf32, #tpu.memory_space<vmem>>, vector<1x256xf32>,
    return
  }
  func.func @transform_0(%arg0: i32) -> (i32, i32) {
    %c0_i32 = arith.constant 0 : i32
    %c0_i32_0 = arith.constant 0 : i32
    return %arg0, %c0_i32 : i32, i32
  }
  func.func @transform_1(%arg0: i32) -> (i32, i32) {
    %c0_i32 = arith.constant 0 : i32
    %c0_i32_0 = arith.constant 0 : i32
    %c0_i32_1 = arith.constant 0 : i32
    return %c0_i32, %c0_i32_0 : i32, i32
  }
  func.func @transform_2(%arg0: i32) -> (i32, i32) {
    %c0_i32 = arith.constant 0 : i32
    %c0_i32_0 = arith.constant 0 : i32
    %c0_i32_1 = arith.constant 0 : i32
    return %c0_i32, %c0_i32_0 : i32, i32
  }
  func.func @transform_3(%arg0: i32) -> (i32, i32) {
    %c0_i32 = arith.constant 0 : i32
    %c0_i32_0 = arith.constant 0 : i32
    %c0_i32_1 = arith.constant 0 : i32
    return %c0_i32, %c0_i32_0 : i32, i32
  }
  func.func @transform_4(%arg0: i32) -> (i32, i32) {
    %c0_i32 = arith.constant 0 : i32
    %c0_i32_0 = arith.constant 0 : i32
    %c0_i32_1 = arith.constant 0 : i32
    return %c0_i32, %c0_i32_0 : i32, i32
  }
  func.func @transform_5(%arg0: i32) -> (i32, i32) {
    %c0_i32 = arith.constant 0 : i32
    %c0_i32_0 = arith.constant 0 : i32
    %c0_i32_1 = arith.constant 0 : i32
    return %c0_i32, %c0_i32_0 : i32, i32
  }
  func.func @transform_6(%arg0: i32) -> (i32, i32) {
    %c0_i32 = arith.constant 0 : i32
    %c0_i32_0 = arith.constant 0 : i32
    %c0_i32_1 = arith.constant 0 : i32
    return %c0_i32, %c0_i32_0 : i32, i32
  }
  func.func @transform_7(%arg0: i32) -> (i32, i32) {
    %c0_i32 = arith.constant 0 : i32
    %c0_i32_0 = arith.constant 0 : i32
    return %c0_i32, %arg0 : i32, i32
  }
}

</mosaic_0001>

<llo_original>
// kernel: tpu_custom_call.1
$region0: #{tpu_custom_call.1}
  #allocation0 [shape = 'u32[]', space=smem, size = 0x4, offset = 0x4, fixed_abs, tag = 'smem constant byte address 0x4 - core index']
  #allocation1 [shape = 'u32[144,128]{1,0:T(1,128)}', space=vmem, size = 0x12000, scoped, tag = 'internal scratch']
  #allocation2 [shape = 'f32[1,1]{1,0:T(1,128)S(1)}', space=vmem, size = 0x200, scoped, tag = 'scoped memory for tpu_custom_call.1']
  %s0 = inlined_call_operand.vmem [shape: f32[256,7], index: 0, kind: input, shape index: {}]
  %s1 = inlined_call_operand.vmem [shape: f32[50,7], index: 1, kind: input, shape index: {}]
  %s2 = inlined_call_operand.vmem [shape: f32[50,1], index: 2, kind: input, shape index: {}]
  %s3 = inlined_call_operand.vmem [shape: f32[50,50], index: 3, kind: input, shape index: {}]
  %s4 = inlined_call_operand.vmem [shape: f32[50,1], index: 4, kind: input, shape index: {}]
  %s5 = inlined_call_operand.vmem [shape: f32[1,50], index: 5, kind: input, shape index: {}]
  %s6 = inlined_call_operand.<no memory space> [shape: f32[1,1], index: 6, kind: input, shape index: {}]
  %s7 = inlined_call_operand.hbm [shape: f32[1,256], index: 7, kind: output, shape index: {}]
  %s8 = sld [smem:[#allocation0]]
  $region38: #{tpu_custom_call.1} parent=0
    _
  %s10 = ssub.s32 1, %s8
  %s11 = scalar_select 0, %s10, %s8
  %v12 = vstv %s6
  %13 = vst [vmem:[#allocation2] sm:$0x1] %v12
  $region1: #{tpu_custom_call.1} parent=0
    #allocation3 [shape = 'u8[1024]{0}', space=vmem, size = 0x400, scoped, tag = 'output window, operand 0, single buffered']
    #allocation4 [shape = 's32[1]{0}', space=sflag, size = 0x4, scoped, tag = 'scoped memory for tpu_custom_call.1']
    %14 = vsyncpa [#allocation4], 0
    // Predicated region
    $region2: #{tpu_custom_call.1} parent=1 // pred_check
      _
    $region3: #{tpu_custom_call.1} parent=1 // pred_check_branch
      %16 = sbr.rel (0) target = $region5
    $region4: #{tpu_custom_call.1} parent=1 // pred_region
      _
    $region5: #{tpu_custom_call.1} parent=1 // pred_fallthru
      _
    // Predicated region
    $region6: #{tpu_custom_call.1} parent=1 // pred_check
      _
    $region7: #{tpu_custom_call.1} parent=1 // pred_check_branch
      %18 = sbr.rel (0) target = $region9
    $region8: #{tpu_custom_call.1} parent=1 // pred_region
      _
    $region9: #{tpu_custom_call.1} parent=1 // pred_fallthru
      _
    // Predicated region
    $region10: #{tpu_custom_call.1} parent=1 // pred_check
      _
    $region11: #{tpu_custom_call.1} parent=1 // pred_check_branch
      %20 = sbr.rel (0) target = $region13
    $region12: #{tpu_custom_call.1} parent=1 // pred_region
      _
    $region13: #{tpu_custom_call.1} parent=1 // pred_fallthru
      _
    // Predicated region
    $region14: #{tpu_custom_call.1} parent=1 // pred_check
      _
    $region15: #{tpu_custom_call.1} parent=1 // pred_check_branch
      %22 = sbr.rel (0) target = $region17
    $region16: #{tpu_custom_call.1} parent=1 // pred_region
      _
    $region17: #{tpu_custom_call.1} parent=1 // pred_fallthru
      _
    // Predicated region
    $region18: #{tpu_custom_call.1} parent=1 // pred_check
      _
    $region19: #{tpu_custom_call.1} parent=1 // pred_check_branch
      %24 = sbr.rel (0) target = $region21
    $region20: #{tpu_custom_call.1} parent=1 // pred_region
      _
    $region21: #{tpu_custom_call.1} parent=1 // pred_fallthru
      _
    // Predicated region
    $region22: #{tpu_custom_call.1} parent=1 // pred_check
      _
    $region23: #{tpu_custom_call.1} parent=1 // pred_check_branch
      %26 = sbr.rel (0) target = $region25
    $region24: #{tpu_custom_call.1} parent=1 // pred_region
      _
    $region25: #{tpu_custom_call.1} parent=1 // pred_fallthru
      _
    // Predicated region
    $region26: #{tpu_custom_call.1} parent=1 // pred_check
      _
    $region27: #{tpu_custom_call.1} parent=1 // pred_check_branch
      %28 = sbr.rel (0) target = $region29
    $region28: #{tpu_custom_call.1} parent=1 // pred_region
      _
    $region29: #{tpu_custom_call.1} parent=1 // pred_fallthru
      _
    %v29 = vld [vmem:[%s1] sm:$0xff]
    %v30 = vld [vmem:[%s1 + $0x8] sm:$0xff]
    %v31 = vld [vmem:[%s1 + $0x10] sm:$0xff]
    %v32 = vld [vmem:[%s1 + $0x18] sm:$0xff]
    %v33 = vld [vmem:[%s1 + $0x20] sm:$0xff]
    %v34 = vld [vmem:[%s1 + $0x28] sm:$0xff]
    %v35 = vld [vmem:[%s1 + $0x30] sm:$0x3]
    %v36 = vld [vmem:[%s2] sm:$0xff]
    %v37 = vld [vmem:[%s2 + $0x8] sm:$0xff]
    %v38 = vld [vmem:[%s2 + $0x10] sm:$0xff]
    %v39 = vld [vmem:[%s2 + $0x18] sm:$0xff]
    %v40 = vld [vmem:[%s2 + $0x20] sm:$0xff]
    %v41 = vld [vmem:[%s2 + $0x28] sm:$0xff]
    %v42 = vld [vmem:[%s2 + $0x30] sm:$0x3]
    %v43 = vld [vmem:[%s3] sm:$0xff]
    %v44 = vld [vmem:[%s3 + $0x8] sm:$0xff]
    %v45 = vld [vmem:[%s3 + $0x10] sm:$0xff]
    %v46 = vld [vmem:[%s3 + $0x18] sm:$0xff]
    %v47 = vld [vmem:[%s3 + $0x20] sm:$0xff]
    %v48 = vld [vmem:[%s3 + $0x28] sm:$0xff]
    %v49 = vld [vmem:[%s3 + $0x30] sm:$0x3]
    %v50 = vld [vmem:[%s4] sm:$0xff]
    %v51 = vld [vmem:[%s4 + $0x8] sm:$0xff]
    %v52 = vld [vmem:[%s4 + $0x10] sm:$0xff]
    %v53 = vld [vmem:[%s4 + $0x18] sm:$0xff]
    %v54 = vld [vmem:[%s4 + $0x20] sm:$0xff]
    %v55 = vld [vmem:[%s4 + $0x28] sm:$0xff]
    %v56 = vld [vmem:[%s4 + $0x30] sm:$0x3]
    %v57 = vld [vmem:[%s5] sm:$0x1]
    %v58 = vld [vmem:[#allocation2] sm:$0x1]
    %v59 = vld [vmem:[%s0] sm:$0xff]
    %v60 = vld [vmem:[%s0 + $0x8] sm:$0xff]
    %v61 = vld [vmem:[%s0 + $0x10] sm:$0xff]
    %v62 = vld [vmem:[%s0 + $0x18] sm:$0xff]
    %v63 = vld [vmem:[%s0 + $0x20] sm:$0xff]
    %v64 = vld [vmem:[%s0 + $0x28] sm:$0xff]
    %v65 = vld [vmem:[%s0 + $0x30] sm:$0xff]
    %v66 = vld [vmem:[%s0 + $0x38] sm:$0xff]
    %v67 = vld [vmem:[%s0 + $0x40] sm:$0xff]
    %v68 = vld [vmem:[%s0 + $0x48] sm:$0xff]
    %v69 = vld [vmem:[%s0 + $0x50] sm:$0xff]
    %v70 = vld [vmem:[%s0 + $0x58] sm:$0xff]
    %v71 = vld [vmem:[%s0 + $0x60] sm:$0xff]
    %v72 = vld [vmem:[%s0 + $0x68] sm:$0xff]
    %v73 = vld [vmem:[%s0 + $0x70] sm:$0xff]
    %v74 = vld [vmem:[%s0 + $0x78] sm:$0xff]
    %v75 = vld [vmem:[%s0 + $0x80] sm:$0xff]
    %v76 = vld [vmem:[%s0 + $0x88] sm:$0xff]
    %v77 = vld [vmem:[%s0 + $0x90] sm:$0xff]
    %v78 = vld [vmem:[%s0 + $0x98] sm:$0xff]
    %v79 = vld [vmem:[%s0 + $0xa0] sm:$0xff]
    %v80 = vld [vmem:[%s0 + $0xa8] sm:$0xff]
    %v81 = vld [vmem:[%s0 + $0xb0] sm:$0xff]
    %v82 = vld [vmem:[%s0 + $0xb8] sm:$0xff]
    %v83 = vld [vmem:[%s0 + $0xc0] sm:$0xff]
    %v84 = vld [vmem:[%s0 + $0xc8] sm:$0xff]
    %v85 = vld [vmem:[%s0 + $0xd0] sm:$0xff]
    %v86 = vld [vmem:[%s0 + $0xd8] sm:$0xff]
    %v87 = vld [vmem:[%s0 + $0xe0] sm:$0xff]
    %v88 = vld [vmem:[%s0 + $0xe8] sm:$0xff]
    %v89 = vld [vmem:[%s0 + $0xf0] sm:$0xff]
    %v90 = vld [vmem:[%s0 + $0xf8] sm:$0xff]
    %92 = vset.pattern.permute.xlu0 0
    %93 = vperm.xlu0 %92, %v36
    %v94 = vpop.permute.xlu0 %93
    %97 = vset.pattern.permute.xlu0 0
    %98 = vperm.xlu0 %97, %v37
    %v99 = vpop.permute.xlu0 %98
    %102 = vset.pattern.permute.xlu0 0
    %103 = vperm.xlu0 %102, %v38
    %v104 = vpop.permute.xlu0 %103
    %107 = vset.pattern.permute.xlu0 0
    %108 = vperm.xlu0 %107, %v39
    %v109 = vpop.permute.xlu0 %108
    %112 = vset.pattern.permute.xlu0 0
    %113 = vperm.xlu0 %112, %v40
    %v114 = vpop.permute.xlu0 %113
    %117 = vset.pattern.permute.xlu0 0
    %118 = vperm.xlu0 %117, %v41
    %v119 = vpop.permute.xlu0 %118
    %122 = vset.pattern.permute.xlu0 0
    %123 = vperm.xlu0 %122, %v42
    %v124 = vpop.permute.xlu0 %123
    %vm126 = vcmask 56320
    %v128 = vsel %vm126, %v29, 0
    %v131 = vsel %vm126, %v30, 0
    %v134 = vsel %vm126, %v31, 0
    %v137 = vsel %vm126, %v32, 0
    %v140 = vsel %vm126, %v33, 0
    %v143 = vsel %vm126, %v34, 0
    %v146 = vsel %vm126, %v35, 0
    %v149 = vsel %vm126, %v59, 0
    %v152 = vsel %vm126, %v60, 0
    %v155 = vsel %vm126, %v61, 0
    %v158 = vsel %vm126, %v62, 0
    %v161 = vsel %vm126, %v63, 0
    %v164 = vsel %vm126, %v64, 0
    %v167 = vsel %vm126, %v65, 0
    %v170 = vsel %vm126, %v66, 0
    %v173 = vsel %vm126, %v67, 0
    %v176 = vsel %vm126, %v68, 0
    %v179 = vsel %vm126, %v69, 0
    %v182 = vsel %vm126, %v70, 0
    %v185 = vsel %vm126, %v71, 0
    %v188 = vsel %vm126, %v72, 0
    %v191 = vsel %vm126, %v73, 0
    %v194 = vsel %vm126, %v74, 0
    %v197 = vsel %vm126, %v75, 0
    %v200 = vsel %vm126, %v76, 0
    %v203 = vsel %vm126, %v77, 0
    %v206 = vsel %vm126, %v78, 0
    %v209 = vsel %vm126, %v79, 0
    %v212 = vsel %vm126, %v80, 0
    %v215 = vsel %vm126, %v81, 0
    %v218 = vsel %vm126, %v82, 0
    %v221 = vsel %vm126, %v83, 0
    %v224 = vsel %vm126, %v84, 0
    %v227 = vsel %vm126, %v85, 0
    %v230 = vsel %vm126, %v86, 0
    %v233 = vsel %vm126, %v87, 0
    %v236 = vsel %vm126, %v88, 0
    %v239 = vsel %vm126, %v89, 0
    %v242 = vsel %vm126, %v90, 0
    %244 = vmatprep.subr.mxu0 0.0
    %245 = vmatpush1.xpose.msra.mxu0 %v149
    %246 = vmatprep.subr.mxu0 0.0
    %247 = vmatpush1.xpose.msra.mxu0 %v152
    %248 = vmatprep.subr.mxu0 0.0
    %249 = vmatpush1.xpose.msra.mxu0 %v155
    %250 = vmatprep.subr.mxu0 0.0
    %251 = vmatpush1.xpose.msra.mxu0 %v158
    %252 = vmatprep.subr.mxu0 0.0
    %253 = vmatpush1.xpose.msra.mxu0 %v161
    %254 = vmatprep.subr.mxu0 0.0
    %255 = vmatpush1.xpose.msra.mxu0 %v164
    %256 = vmatprep.subr.mxu0 0.0
    %257 = vmatpush1.xpose.msra.mxu0 %v167
    %258 = vmatprep.subr.mxu0 0.0
    %259 = vmatpush1.xpose.msra.mxu0 %v170
    %260 = vmatprep.subr.mxu0 0.0
    %261 = vmatpush1.xpose.msra.mxu0 %v173
    %262 = vmatprep.subr.mxu0 0.0
    %263 = vmatpush1.xpose.msra.mxu0 %v176
    %264 = vmatprep.subr.mxu0 0.0
    %265 = vmatpush1.xpose.msra.mxu0 %v179
    %266 = vmatprep.subr.mxu0 0.0
    %267 = vmatpush1.xpose.msra.mxu0 %v182
    %268 = vmatprep.subr.mxu0 0.0
    %269 = vmatpush1.xpose.msra.mxu0 %v185
    %270 = vmatprep.subr.mxu0 0.0
    %271 = vmatpush1.xpose.msra.mxu0 %v188
    %272 = vmatprep.subr.mxu0 0.0
    %273 = vmatpush1.xpose.msra.mxu0 %v191
    %274 = vmatprep.subr.mxu0 0.0
    %275 = vmatpush1.xpose.msra.mxu0 %v194
    %276 = vmatprep.subr.mxu0 0.0
    %277 = vmatpush1.xpose.msra.mxu0 %v197
    %278 = vmatprep.subr.mxu0 0.0
    %279 = vmatpush1.xpose.msra.mxu0 %v200
    %280 = vmatprep.subr.mxu0 0.0
    %281 = vmatpush1.xpose.msra.mxu0 %v203
    %282 = vmatprep.subr.mxu0 0.0
    %283 = vmatpush1.xpose.msra.mxu0 %v206
    %284 = vmatprep.subr.mxu0 0.0
    %285 = vmatpush1.xpose.msra.mxu0 %v209
    %286 = vmatprep.subr.mxu0 0.0
    %287 = vmatpush1.xpose.msra.mxu0 %v212
    %288 = vmatprep.subr.mxu0 0.0
    %289 = vmatpush1.xpose.msra.mxu0 %v215
    %290 = vmatprep.subr.mxu0 0.0
    %291 = vmatpush1.xpose.msra.mxu0 %v218
    %292 = vmatprep.subr.mxu0 0.0
    %293 = vmatpush1.xpose.msra.mxu0 %v221
    %294 = vmatprep.subr.mxu0 0.0
    %295 = vmatpush1.xpose.msra.mxu0 %v224
    %296 = vmatprep.subr.mxu0 0.0
    %297 = vmatpush1.xpose.msra.mxu0 %v227
    %298 = vmatprep.subr.mxu0 0.0
    %299 = vmatpush1.xpose.msra.mxu0 %v230
    %300 = vmatprep.subr.mxu0 0.0
    %301 = vmatpush1.xpose.msra.mxu0 %v233
    %302 = vmatprep.subr.mxu0 0.0
    %303 = vmatpush1.xpose.msra.mxu0 %v236
    %304 = vmatprep.subr.mxu0 0.0
    %305 = vmatpush1.xpose.msra.mxu0 %v239
    %306 = vmatprep.subr.mxu0 0.0
    %307 = vmatpush1.xpose.msra.mxu0 %v242
    %308 = vmatprep.mubr.f32.mxu0 0.0
    %309 = vmatmul.mubr.f32.gmra.mrb[0].mxu0 %v128
    %v310 = vpop.f32.mrb[0].mxu0
    %v311 = vadd.f32 %v94, %v310
    %v312 = vpop.f32.mrb[0].mxu0
    %v313 = vadd.f32 %v94, %v312
    %314 = vmatprep.mubr.f32.mxu0 0.0
    %315 = vmatmul.mubr.f32.gmra.mrb[0].mxu0 %v131
    %v316 = vpop.f32.mrb[0].mxu0
    %v317 = vadd.f32 %v99, %v316
    %v318 = vpop.f32.mrb[0].mxu0
    %v319 = vadd.f32 %v99, %v318
    %320 = vmatprep.mubr.f32.mxu0 0.0
    %321 = vmatmul.mubr.f32.gmra.mrb[0].mxu0 %v134
    %v322 = vpop.f32.mrb[0].mxu0
    %v323 = vadd.f32 %v104, %v322
    %v324 = vpop.f32.mrb[0].mxu0
    %v325 = vadd.f32 %v104, %v324
    %326 = vmatprep.mubr.f32.mxu0 0.0
    %327 = vmatmul.mubr.f32.gmra.mrb[0].mxu0 %v137
    %v328 = vpop.f32.mrb[0].mxu0
    %v329 = vadd.f32 %v109, %v328
    %v330 = vpop.f32.mrb[0].mxu0
    %v331 = vadd.f32 %v109, %v330
    %332 = vmatprep.mubr.f32.mxu0 0.0
    %333 = vmatmul.mubr.f32.gmra.mrb[0].mxu0 %v140
    %v334 = vpop.f32.mrb[0].mxu0
    %v335 = vadd.f32 %v114, %v334
    %v336 = vpop.f32.mrb[0].mxu0
    %v337 = vadd.f32 %v114, %v336
    %338 = vmatprep.mubr.f32.mxu0 0.0
    %339 = vmatmul.mubr.f32.gmra.mrb[0].mxu0 %v143
    %v340 = vpop.f32.mrb[0].mxu0
    %v341 = vadd.f32 %v119, %v340
    %v342 = vpop.f32.mrb[0].mxu0
    %v343 = vadd.f32 %v119, %v342
    %344 = vmatprep.mubr.f32.mxu0 0.0
    %345 = vmatmul.mubr.f32.gmra.mrb[0].mxu0 %v146
    %v346 = vpop.f32.mrb[0].mxu0
    %v347 = vadd.f32 %v124, %v346
    %v348 = vpop.f32.mrb[0].mxu0
    %v349 = vadd.f32 %v124, %v348
    %350 = vdwg.mxu0
    %v351 = vmax.f32 %v311, 0.0
    %v352 = vmax.f32 %v313, 0.0
    %v353 = vmax.f32 %v317, 0.0
    %v354 = vmax.f32 %v319, 0.0
    %v355 = vmax.f32 %v323, 0.0
    %v356 = vmax.f32 %v325, 0.0
    %v357 = vmax.f32 %v329, 0.0
    %v358 = vmax.f32 %v331, 0.0
    %v359 = vmax.f32 %v335, 0.0
    %v360 = vmax.f32 %v337, 0.0
    %v361 = vmax.f32 %v341, 0.0
    %v362 = vmax.f32 %v343, 0.0
    %v363 = vmax.f32 %v347, 0.0
    %v364 = vmax.f32 %v349, 0.0
    %366 = vset.pattern.permute.xlu0 0
    %367 = vperm.xlu0 %366, %v50
    %v368 = vpop.permute.xlu0 %367
    %371 = vset.pattern.permute.xlu0 0
    %372 = vperm.xlu0 %371, %v51
    %v373 = vpop.permute.xlu0 %372
    %376 = vset.pattern.permute.xlu0 0
    %377 = vperm.xlu0 %376, %v52
    %v378 = vpop.permute.xlu0 %377
    %381 = vset.pattern.permute.xlu0 0
    %382 = vperm.xlu0 %381, %v53
    %v383 = vpop.permute.xlu0 %382
    %386 = vset.pattern.permute.xlu0 0
    %387 = vperm.xlu0 %386, %v54
    %v388 = vpop.permute.xlu0 %387
    %391 = vset.pattern.permute.xlu0 0
    %392 = vperm.xlu0 %391, %v55
    %v393 = vpop.permute.xlu0 %392
    %396 = vset.pattern.permute.xlu0 0
    %397 = vperm.xlu0 %396, %v56
    %v398 = vpop.permute.xlu0 %397
    %vm400 = vcmask 408576
    %v402 = vsel %vm400, %v43, 0
    %v405 = vsel %vm400, %v44, 0
    %v408 = vsel %vm400, %v45, 0
    %v411 = vsel %vm400, %v46, 0
    %v414 = vsel %vm400, %v47, 0
    %v417 = vsel %vm400, %v48, 0
    %v420 = vsel %vm400, %v49, 0
    %vm422 = vcmask 1041408
    %v424 = vsel %vm422, %v363, 0
    %v427 = vsel %vm422, %v364, 0
    %429 = vmatprep.subr.mxu0 %v352
    %430 = vmatpush1.msra.mxu0 %v351
    %431 = vmatprep.subr.mxu0 %v354
    %432 = vmatpush1.msra.mxu0 %v353
    %433 = vmatprep.subr.mxu0 %v356
    %434 = vmatpush1.msra.mxu0 %v355
    %435 = vmatprep.subr.mxu0 %v358
    %436 = vmatpush1.msra.mxu0 %v357
    %437 = vmatprep.subr.mxu0 %v360
    %438 = vmatpush1.msra.mxu0 %v359
    %439 = vmatprep.subr.mxu0 %v362
    %440 = vmatpush1.msra.mxu0 %v361
    %441 = vmatprep.subr.mxu0 %v427
    %442 = vmatpush1.msra.mxu0 %v424
    %443 = vmatprep.subr.mxu0 0.0
    %444 = vmatpush1.msra.mxu0 0.0
    %445 = vmatprep.subr.mxu0 0.0
    %446 = vmatpush1.msra.mxu0 0.0
    %447 = vmatprep.subr.mxu0 0.0
    %448 = vmatpush1.msra.mxu0 0.0
    %449 = vmatprep.subr.mxu0 0.0
    %450 = vmatpush1.msra.mxu0 0.0
    %451 = vmatprep.subr.mxu0 0.0
    %452 = vmatpush1.msra.mxu0 0.0
    %453 = vmatprep.subr.mxu0 0.0
    %454 = vmatpush1.msra.mxu0 0.0
    %455 = vmatprep.subr.mxu0 0.0
    %456 = vmatpush1.msra.mxu0 0.0
    %457 = vmatprep.subr.mxu0 0.0
    %458 = vmatpush1.msra.mxu0 0.0
    %459 = vmatprep.subr.mxu0 0.0
    %460 = vmatpush1.msra.mxu0 0.0
    %461 = vmatprep.subr.mxu0 0.0
    %462 = vmatpush1.msra.mxu0 0.0
    %463 = vmatprep.subr.mxu0 0.0
    %464 = vmatpush1.msra.mxu0 0.0
    %465 = vmatprep.subr.mxu0 0.0
    %466 = vmatpush1.msra.mxu0 0.0
    %467 = vmatprep.subr.mxu0 0.0
    %468 = vmatpush1.msra.mxu0 0.0
    %469 = vmatprep.subr.mxu0 0.0
    %470 = vmatpush1.msra.mxu0 0.0
    %471 = vmatprep.subr.mxu0 0.0
    %472 = vmatpush1.msra.mxu0 0.0
    %473 = vmatprep.subr.mxu0 0.0
    %474 = vmatpush1.msra.mxu0 0.0
    %475 = vmatprep.subr.mxu0 0.0
    %476 = vmatpush1.msra.mxu0 0.0
    %477 = vmatprep.subr.mxu0 0.0
    %478 = vmatpush1.msra.mxu0 0.0
    %479 = vmatprep.subr.mxu0 0.0
    %480 = vmatpush1.msra.mxu0 0.0
    %481 = vmatprep.subr.mxu0 0.0
    %482 = vmatpush1.msra.mxu0 0.0
    %483 = vmatprep.subr.mxu0 0.0
    %484 = vmatpush1.msra.mxu0 0.0
    %485 = vmatprep.subr.mxu0 0.0
    %486 = vmatpush1.msra.mxu0 0.0
    %487 = vmatprep.subr.mxu0 0.0
    %488 = vmatpush1.msra.mxu0 0.0
    %489 = vmatprep.subr.mxu0 0.0
    %490 = vmatpush1.msra.mxu0 0.0
    %491 = vmatprep.subr.mxu0 0.0
    %492 = vmatpush1.msra.mxu0 0.0
    %493 = vmatprep.mubr.f32.mxu0 0.0
    %494 = vmatmul.mubr.f32.gmra.mrb[0].mxu0 %v402
    %v495 = vpop.f32.mrb[0].mxu0
    %v496 = vadd.f32 %v368, %v495
    %v497 = vpop.f32.mrb[0].mxu0
    %v498 = vadd.f32 %v368, %v497
    %499 = vmatprep.mubr.f32.mxu0 0.0
    %500 = vmatmul.mubr.f32.gmra.mrb[0].mxu0 %v405
    %v501 = vpop.f32.mrb[0].mxu0
    %v502 = vadd.f32 %v373, %v501
    %v503 = vpop.f32.mrb[0].mxu0
    %v504 = vadd.f32 %v373, %v503
    %505 = vmatprep.mubr.f32.mxu0 0.0
    %506 = vmatmul.mubr.f32.gmra.mrb[0].mxu0 %v408
    %v507 = vpop.f32.mrb[0].mxu0
    %v508 = vadd.f32 %v378, %v507
    %v509 = vpop.f32.mrb[0].mxu0
    %v510 = vadd.f32 %v378, %v509
    %511 = vmatprep.mubr.f32.mxu0 0.0
    %512 = vmatmul.mubr.f32.gmra.mrb[0].mxu0 %v411
    %v513 = vpop.f32.mrb[0].mxu0
    %v514 = vadd.f32 %v383, %v513
    %v515 = vpop.f32.mrb[0].mxu0
    %v516 = vadd.f32 %v383, %v515
    %517 = vmatprep.mubr.f32.mxu0 0.0
    %518 = vmatmul.mubr.f32.gmra.mrb[0].mxu0 %v414
    %v519 = vpop.f32.mrb[0].mxu0
    %v520 = vadd.f32 %v388, %v519
    %v521 = vpop.f32.mrb[0].mxu0
    %v522 = vadd.f32 %v388, %v521
    %523 = vmatprep.mubr.f32.mxu0 0.0
    %524 = vmatmul.mubr.f32.gmra.mrb[0].mxu0 %v417
    %v525 = vpop.f32.mrb[0].mxu0
    %v526 = vadd.f32 %v393, %v525
    %v527 = vpop.f32.mrb[0].mxu0
    %v528 = vadd.f32 %v393, %v527
    %529 = vmatprep.mubr.f32.mxu0 0.0
    %530 = vmatmul.mubr.f32.gmra.mrb[0].mxu0 %v420
    %v531 = vpop.f32.mrb[0].mxu0
    %v532 = vadd.f32 %v398, %v531
    %v533 = vpop.f32.mrb[0].mxu0
    %v534 = vadd.f32 %v398, %v533
    %535 = vdwg.mxu0
    %v536 = vmax.f32 %v496, 0.0
    %v537 = vmax.f32 %v498, 0.0
    %v538 = vmax.f32 %v502, 0.0
    %v539 = vmax.f32 %v504, 0.0
    %v540 = vmax.f32 %v508, 0.0
    %v541 = vmax.f32 %v510, 0.0
    %v542 = vmax.f32 %v514, 0.0
    %v543 = vmax.f32 %v516, 0.0
    %v544 = vmax.f32 %v520, 0.0
    %v545 = vmax.f32 %v522, 0.0
    %v546 = vmax.f32 %v526, 0.0
    %v547 = vmax.f32 %v528, 0.0
    %v548 = vmax.f32 %v532, 0.0
    %v549 = vmax.f32 %v534, 0.0
    %551 = vset.pattern.permute.xlu0 0
    %552 = vperm.xlu0 %551, %v58
    %v553 = vpop.permute.xlu0 %552
    %v555 = vlaneseq
    %v556 = vshrl.u32 %v555, 7
    %v557 = vsub.s32 0, %v556
    %v558 = vrot.slane %v553, %v557
    %v560 = vsel %vm400, %v57, 0
    %v563 = vsel %vm422, %v548, 0
    %v566 = vsel %vm422, %v549, 0
    %568 = vmatprep.subr.mxu0 %v537
    %569 = vmatpush1.msra.mxu0 %v536
    %570 = vmatprep.subr.mxu0 %v539
    %571 = vmatpush1.msra.mxu0 %v538
    %572 = vmatprep.subr.mxu0 %v541
    %573 = vmatpush1.msra.mxu0 %v540
    %574 = vmatprep.subr.mxu0 %v543
    %575 = vmatpush1.msra.mxu0 %v542
    %576 = vmatprep.subr.mxu0 %v545
    %577 = vmatpush1.msra.mxu0 %v544
    %578 = vmatprep.subr.mxu0 %v547
    %579 = vmatpush1.msra.mxu0 %v546
    %580 = vmatprep.subr.mxu0 %v566
    %581 = vmatpush1.msra.mxu0 %v563
    %582 = vmatprep.subr.mxu0 0.0
    %583 = vmatpush1.msra.mxu0 0.0
    %584 = vmatprep.subr.mxu0 0.0
    %585 = vmatpush1.msra.mxu0 0.0
    %586 = vmatprep.subr.mxu0 0.0
    %587 = vmatpush1.msra.mxu0 0.0
    %588 = vmatprep.subr.mxu0 0.0
    %589 = vmatpush1.msra.mxu0 0.0
    %590 = vmatprep.subr.mxu0 0.0
    %591 = vmatpush1.msra.mxu0 0.0
    %592 = vmatprep.subr.mxu0 0.0
    %593 = vmatpush1.msra.mxu0 0.0
    %594 = vmatprep.subr.mxu0 0.0
    %595 = vmatpush1.msra.mxu0 0.0
    %596 = vmatprep.subr.mxu0 0.0
    %597 = vmatpush1.msra.mxu0 0.0
    %598 = vmatprep.subr.mxu0 0.0
    %599 = vmatpush1.msra.mxu0 0.0
    %600 = vmatprep.subr.mxu0 0.0
    %601 = vmatpush1.msra.mxu0 0.0
    %602 = vmatprep.subr.mxu0 0.0
    %603 = vmatpush1.msra.mxu0 0.0
    %604 = vmatprep.subr.mxu0 0.0
    %605 = vmatpush1.msra.mxu0 0.0
    %606 = vmatprep.subr.mxu0 0.0
    %607 = vmatpush1.msra.mxu0 0.0
    %608 = vmatprep.subr.mxu0 0.0
    %609 = vmatpush1.msra.mxu0 0.0
    %610 = vmatprep.subr.mxu0 0.0
    %611 = vmatpush1.msra.mxu0 0.0
    %612 = vmatprep.subr.mxu0 0.0
    %613 = vmatpush1.msra.mxu0 0.0
    %614 = vmatprep.subr.mxu0 0.0
    %615 = vmatpush1.msra.mxu0 0.0
    %616 = vmatprep.subr.mxu0 0.0
    %617 = vmatpush1.msra.mxu0 0.0
    %618 = vmatprep.subr.mxu0 0.0
    %619 = vmatpush1.msra.mxu0 0.0
    %620 = vmatprep.subr.mxu0 0.0
    %621 = vmatpush1.msra.mxu0 0.0
    %622 = vmatprep.subr.mxu0 0.0
    %623 = vmatpush1.msra.mxu0 0.0
    %624 = vmatprep.subr.mxu0 0.0
    %625 = vmatpush1.msra.mxu0 0.0
    %626 = vmatprep.subr.mxu0 0.0
    %627 = vmatpush1.msra.mxu0 0.0
    %628 = vmatprep.subr.mxu0 0.0
    %629 = vmatpush1.msra.mxu0 0.0
    %630 = vmatprep.subr.mxu0 0.0
    %631 = vmatpush1.msra.mxu0 0.0
    %632 = vmatprep.mubr.f32.mxu0 0.0
    %633 = vmatmul.mubr.f32.gmra.mrb[0].mxu0 %v560
    %v634 = vpop.f32.mrb[0].mxu0
    %v635 = vadd.f32 %v558, %v634
    %v636 = vpop.f32.mrb[0].mxu0
    %v637 = vadd.f32 %v558, %v636
    %638 = vdwg.mxu0
    %v641 = vcombine.low %v635, %v637
    %v643 = vunpack.c.l.s4 1966171168
    %v644 = vunpack.c.0.s8 %v643
    %v645 = vlaneseq
    %v646 = vshrl.u32 %v645, 7
    %v647 = vsub.s32 %v644, %v646
    %v648 = vrot.slane %v641, %v647
    %v650 = vunpack.c.l.s4 1966171168
    %v651 = vunpack.c.0.s8 %v650
    %v652 = vlaneseq
    %v653 = vshrl.u32 %v652, 7
    %v654 = vsub.s32 %v651, %v653
    %v655 = vrot.slane %v648, %v654
    %v657 = vlaneseq
    %vm658 = vcmp.ge.s32.totalorder %v657, 0
    %vm659 = vcmp.lt.s32.totalorder %v657, 256
    %vm660 = vmand %vm658, %vm659
    %661 = vst.msk [vmem:[#allocation3] sm:$0x3] %vm660, %v655
    // Predicated region
    $region30: #{tpu_custom_call.1} parent=1 // pred_check
      _
    $region31: #{tpu_custom_call.1} parent=1 // pred_check_branch
      %663 = sbr.rel (0) target = $region33
    $region32: #{tpu_custom_call.1} parent=1 // pred_region
      %s665 = ssub.s32 32, 32
      %666 = vsyncadd [#allocation4], %s665
      %s668 = sshll.u32 [#allocation3], 4
      %s669 = int_to_ptr.vmem [resolvable:$true] %s668
      %671 = dma.vmem_to_hbm [thread:$0]  %s669, 32, %s7, [#allocation4]
    $region33: #{tpu_custom_call.1} parent=1 // pred_fallthru
      _
    // Predicated region
    $region34: #{tpu_custom_call.1} parent=1 // pred_check
      _
    $region35: #{tpu_custom_call.1} parent=1 // pred_check_branch
      %673 = sbr.rel (0) target = $region37
    $region36: #{tpu_custom_call.1} parent=1 // pred_region
      %674 = dma.done [#allocation4], 32
    $region37: #{tpu_custom_call.1} parent=1 // pred_fallthru
      _
    %675 = vsyncpa [#allocation4], 1

</llo_original>
